<compile_context>
chip_gen: v7x
topology: tpu7x:2x2x1
jax: 0.10.0
libtpu: 0.0.40
codegen_flags: <defaults>
</compile_context>

<pallas_src>
import jax
import jax.numpy as jnp
from jax import lax
from jax.experimental import pallas as pl
from jax.experimental.pallas import tpu as pltpu


# ----------------------------------------------------------------------------
# tiling helpers
# ----------------------------------------------------------------------------
def _mn_tile(dim, target):
    """Tile for a parallel (M/N) dim: full extent if it fits, else 128-aligned."""
    if dim <= target:
        return dim
    return max(128, (target // 128) * 128)


def _k_tile(dim, target):
    """Tile for the contraction dim: must divide K exactly (a padded partial
    K block would accumulate garbage); otherwise fall back to the whole dim."""
    if dim <= target:
        return dim
    t = (target // 128) * 128
    while t >= 128:
        if dim % t == 0:
            return t
        t -= 128
    return dim


_DIMSEM = ("parallel", "parallel", "arbitrary")


# ----------------------------------------------------------------------------
# fused:  out = act( alpha * (op(a) @ op(b) + bias) + beta * residual )
# op(x) = x.T when the corresponding trans flag is set; the transpose is NOT
# materialized — the kernel contracts the matching dim via dot_general.
# ----------------------------------------------------------------------------
def matmul_fused(a, b, bias=None, residual=None, *, trans_a=False,
                 trans_b=False, alpha=1.0, beta=1.0, activation=None,
                 tm=256, tn=256, tk_target=2048):
    if trans_a:
        K, M = a.shape
    else:
        M, K = a.shape
    if trans_b:
        N, Kb = b.shape
    else:
        Kb, N = b.shape
    assert K == Kb, (a.shape, b.shape)

    tm = _mn_tile(M, tm)
    tn = _mn_tile(N, tn)
    tk = _k_tile(K, tk_target)
    grid = (pl.cdiv(M, tm), pl.cdiv(N, tn), K // tk)

    dnums = (((0 if trans_a else 1,), (1 if trans_b else 0,)), ((), ()))

    a_spec = (pl.BlockSpec((tk, tm), lambda i, j, k: (k, i)) if trans_a
              else pl.BlockSpec((tm, tk), lambda i, j, k: (i, k)))
    b_spec = (pl.BlockSpec((tn, tk), lambda i, j, k: (j, k)) if trans_b
              else pl.BlockSpec((tk, tn), lambda i, j, k: (k, j)))

    in_specs = [a_spec, b_spec]
    args = [a, b]
    has_bias = bias is not None
    has_res = residual is not None
    if has_bias:
        # bias block index depends only on the N grid index -> stays resident.
        in_specs.append(pl.BlockSpec((1, tn), lambda i, j, k: (0, j)))
        args.append(jnp.reshape(bias, (1, N)))
    if has_res:
        in_specs.append(pl.BlockSpec((tm, tn), lambda i, j, k: (i, j)))
        args.append(residual)

    def kernel(*refs):
        a_ref, b_ref = refs[0], refs[1]
        pos = 2
        bias_ref = res_ref = None
        if has_bias:
            bias_ref = refs[pos]
            pos += 1
        if has_res:
            res_ref = refs[pos]
            pos += 1
        o_ref, acc_ref = refs[pos], refs[pos + 1]

        kk = pl.program_id(2)

        @pl.when(kk == 0)
        def _():
            acc_ref[...] = jnp.zeros_like(acc_ref)

        acc_ref[...] += lax.dot_general(a_ref[...], b_ref[...], dnums,
                                        preferred_element_type=jnp.float32)

        @pl.when(kk == pl.num_programs(2) - 1)
        def _():
            out = acc_ref[...]
            if has_bias:
                out = out + bias_ref[...]
            if alpha != 1.0:
                out = out * alpha
            if has_res:
                out = out + beta * res_ref[...]
            if activation == "relu":
                out = jnp.maximum(out, 0.0)
            o_ref[...] = out.astype(o_ref.dtype)

    return pl.pallas_call(
        kernel,
        out_shape=jax.ShapeDtypeStruct((M, N), jnp.float32),
        grid=grid,
        in_specs=in_specs,
        out_specs=pl.BlockSpec((tm, tn), lambda i, j, k: (i, j)),
        scratch_shapes=[pltpu.VMEM((tm, tn), jnp.float32)],
        compiler_params=pltpu.CompilerParams(dimension_semantics=_DIMSEM),
    )(*args)


# ----------------------------------------------------------------------------
# fused SAGEConv(mean) layer:
#   out = act( h @ W_self.T + h_neigh @ W_neigh.T + bias )
# (h_neigh = mean of in-neighbour features, computed by a matmul_fused call
#  against a row-normalized adjacency.)  Both projections share one f32
# accumulator so the layer is a single pallas_call.
# ----------------------------------------------------------------------------
def sage_layer(h, h_neigh, w_self, w_neigh, bias, *, activation=None,
               tm=256, tn=256, tk_target=2048):
    M, K = h.shape
    N = w_self.shape[0]                       # PyTorch (Out, In) layout
    tm = _mn_tile(M, tm)
    tn = _mn_tile(N, tn)
    tk = _k_tile(K, tk_target)
    grid = (pl.cdiv(M, tm), pl.cdiv(N, tn), K // tk)
    dn = (((1,), (1,)), ((), ()))             # contract trailing (In) dims

    def kernel(h_ref, hn_ref, ws_ref, wn_ref, b_ref, o_ref, acc_ref):
        kk = pl.program_id(2)

        @pl.when(kk == 0)
        def _():
            acc_ref[...] = jnp.zeros_like(acc_ref)

        acc_ref[...] += lax.dot_general(h_ref[...], ws_ref[...], dn,
                                        preferred_element_type=jnp.float32)
        acc_ref[...] += lax.dot_general(hn_ref[...], wn_ref[...], dn,
                                        preferred_element_type=jnp.float32)

        @pl.when(kk == pl.num_programs(2) - 1)
        def _():
            out = acc_ref[...] + b_ref[...]
            if activation == "relu":
                out = jnp.maximum(out, 0.0)
            o_ref[...] = out.astype(o_ref.dtype)

    return pl.pallas_call(
        kernel,
        out_shape=jax.ShapeDtypeStruct((M, N), jnp.float32),
        grid=grid,
        in_specs=[
            pl.BlockSpec((tm, tk), lambda i, j, k: (i, k)),   # h
            pl.BlockSpec((tm, tk), lambda i, j, k: (i, k)),   # h_neigh
            pl.BlockSpec((tn, tk), lambda i, j, k: (j, k)),   # W_self
            pl.BlockSpec((tn, tk), lambda i, j, k: (j, k)),   # W_neigh
            pl.BlockSpec((1, tn), lambda i, j, k: (0, j)),    # bias (N-resident)
        ],
        out_specs=pl.BlockSpec((tm, tn), lambda i, j, k: (i, j)),
        scratch_shapes=[pltpu.VMEM((tm, tn), jnp.float32)],
        compiler_params=pltpu.CompilerParams(dimension_semantics=_DIMSEM),
    )(h, h_neigh, w_self, w_neigh, jnp.reshape(bias, (1, N)))


# ----------------------------------------------------------------------------
# Encoder2 forward (eval mode)
# ----------------------------------------------------------------------------
def encoder2_forward(params, graph):
    m1, m2 = graph["miRNA_dis"], graph["gene_dis"]

    # CrossCompressUnit: only output2 (A2) and output3 (B1) reach Encoder2's
    # output; output1 / output4 are dead and skipped.
    a2 = matmul_fused(m1, params["W1"], trans_a=True)     # M1.T @ W1 -> (n_dis, emb)
    b1 = matmul_fused(m2, params["W4"])                   # M2   @ W4 -> (n_gene, emb)

    # Disease / gene embeddings: Linear + (eval) Dropout identity, then
    # 0.9 * proj + 0.1 * cross-features — fused into one kernel each.
    rep_dis = matmul_fused(graph["d_features"], params["w_dis"],
                           bias=params["b_dis"], residual=a2,
                           trans_b=True, alpha=0.9, beta=0.1)
    rep_gen = matmul_fused(graph["g_features"], params["w_gen"],
                           bias=params["b_gen"], residual=b1,
                           trans_b=True, alpha=0.9, beta=0.1)

    # Node features ordered [disease nodes ; gene nodes].
    h = jnp.concatenate([rep_dis, rep_gen], axis=0)

    # SAGEConv(mean) -> ReLU -> SAGEConv(mean)
    a_norm = graph["a_norm"]
    hn = matmul_fused(a_norm, h)                          # mean of in-neighbours
    h = sage_layer(h, hn, params["ws1"], params["wn1"], params["bs1"],
                   activation="relu")
    hn = matmul_fused(a_norm, h)
    h = sage_layer(h, hn, params["ws2"], params["wn2"], params["bs2"])
    return h


def reference_forward(params, graph):
    a2 = graph["miRNA_dis"].T @ params["W1"]
    b1 = graph["gene_dis"] @ params["W4"]
    rep_dis = 0.9 * (graph["d_features"] @ params["w_dis"].T + params["b_dis"]) \
        + 0.1 * a2
    rep_gen = 0.9 * (graph["g_features"] @ params["w_gen"].T + params["b_gen"]) \
        + 0.1 * b1
    h = jnp.concatenate([rep_dis, rep_gen], axis=0)
    hn = graph["a_norm"] @ h
    h = jnp.maximum(h @ params["ws1"].T + hn @ params["wn1"].T + params["bs1"], 0.0)
    hn = graph["a_norm"] @ h
    return h @ params["ws2"].T + hn @ params["wn2"].T + params["bs2"]


if __name__ == "__main__":
    key = jax.random.PRNGKey(0)
    ks = jax.random.split(key, 18)

    emb = 128                    # embedding_size (lane-dense)
    hid = 64                     # SAGEConv output size (fixed by the module)
    n_dis, n_gene, n_mirna = 16, 24, 8
    n_nodes = n_dis + n_gene
    d_in, g_in = 383, 4395       # fixed by nn.Linear(383, emb) / nn.Linear(4395, emb)

    def xavier(k, shape):
        bound = (6.0 / (shape[0] + shape[1])) ** 0.5
        return jax.random.uniform(k, shape, minval=-bound, maxval=bound,
                                  dtype=jnp.float32)

    graph = {
        "miRNA_dis":  jax.random.normal(ks[0], (n_mirna, n_dis), jnp.float32),
        "gene_dis":   jax.random.normal(ks[1], (n_gene, n_dis), jnp.float32),
        "d_features": jax.random.normal(ks[2], (n_dis, d_in), jnp.float32),
        "g_features": jax.random.normal(ks[3], (n_gene, g_in), jnp.float32),
    }
    # Deterministic random digraph; row-normalized in-neighbour mean operator.
    adj = jax.random.bernoulli(ks[4], 0.3, (n_nodes, n_nodes)).astype(jnp.float32)
    deg = jnp.maximum(jnp.sum(adj, axis=1, keepdims=True), 1.0)
    graph["a_norm"] = adj / deg

    bd, bg = 1.0 / (d_in ** 0.5), 1.0 / (g_in ** 0.5)
    params = {
        "W1": xavier(ks[5], (n_mirna, emb)),   # CCU W1: (Martrix1.shape[0], emb)
        "W4": xavier(ks[6], (n_dis, emb)),     # CCU W4: (Martrix2.shape[1], emb)
        "w_dis": xavier(ks[7], (emb, d_in)),   # nn.Linear(383, emb) weight (Out, In)
        "b_dis": jax.random.uniform(ks[8], (emb,), minval=-bd, maxval=bd,
                                    dtype=jnp.float32),
        "w_gen": xavier(ks[9], (emb, g_in)),   # nn.Linear(4395, emb) weight (Out, In)
        "b_gen": jax.random.uniform(ks[10], (emb,), minval=-bg, maxval=bg,
                                    dtype=jnp.float32),
        "ws1": xavier(ks[11], (hid, emb)),     # SAGEConv1 fc_self
        "wn1": xavier(ks[12], (hid, emb)),     # SAGEConv1 fc_neigh
        "bs1": jax.random.uniform(ks[13], (hid,), minval=-0.1, maxval=0.1,
                                  dtype=jnp.float32),
        "ws2": xavier(ks[14], (hid, hid)),     # SAGEConv2 fc_self
        "wn2": xavier(ks[15], (hid, hid)),     # SAGEConv2 fc_neigh
        "bs2": jax.random.uniform(ks[16], (hid,), minval=-0.1, maxval=0.1,
                                  dtype=jnp.float32),
    }

    out = encoder2_forward(params, graph)
    out = jax.block_until_ready(out)

    ref = reference_forward(params, graph)
    assert out.shape == (n_nodes, hid), out.shape
    # Tolerance covers MXU f32 accumulation differences over K up to 4395 and
    # three chained matmul layers.
    assert bool(jnp.allclose(out, ref, rtol=1e-2, atol=1e-2)), \
        float(jnp.max(jnp.abs(out - ref)))

    print("KERNEL_OK")
</pallas_src>

<mosaic_0001>
module attributes {stable_mosaic.version = 11 : i64} {
  func.func @kernel(%arg0: i32, %arg1: i32, %arg2: i32, %arg3: memref<8x16xf32, #tpu.memory_space<vmem>>, %arg4: memref<8x128xf32, #tpu.memory_space<vmem>>, %arg5: memref<16x128xf32, #tpu.memory_space<vmem>>, %arg6: memref<16x128xf32, #tpu.memory_space<vmem>>) attributes {dimension_semantics = [#tpu.dimension_semantics<parallel>, #tpu.dimension_semantics<parallel>, #tpu.dimension_semantics<arbitrary>], iteration_bounds = array<i64: 1, 1, 1>, scalar_prefetch = 0 : i64, scratch_operands = 1 : i64, tpu.core_type = #tpu.core_type<tc>, window_params = [{transform_indices = @transform_0, window_bounds = array<i64: 8, 16>}, {transform_indices = @transform_1, window_bounds = array<i64: 8, 128>}, {transform_indices = @transform_2, window_bounds = array<i64: 16, 128>}]} {
    %c0_i32 = arith.constant 0 : i32
    %0 = arith.cmpi eq, %arg2, %c0_i32 : i32
    %1 = arith.extui %0 : i1 to i32
    %c0_i32_0 = arith.constant 0 : i32
    %2 = arith.cmpi ne, %1, %c0_i32_0 : i32
    scf.if %2 {
      %cst_10 = arith.constant 0.000000e+00 : f32
      %12 = vector.broadcast %cst_10 : f32 to vector<16x128xf32>
      %c0_11 = arith.constant 0 : index
      %c0_12 = arith.constant 0 : index
      %13 = vector.load %arg6[%c0_11, %c0_12] : memref<16x128xf32, #tpu.memory_space<vmem>>, vector<16x128xf32>
      tpu.vector_store %arg6[%c0_11, %c0_12], %12 {strides = array<i32>} : memref<16x128xf32, #tpu.memory_space<vmem>>, vector<16x128xf32>,
    } else {
    }
    %c0 = arith.constant 0 : index
    %c0_1 = arith.constant 0 : index
    %3 = vector.load %arg6[%c0, %c0_1] : memref<16x128xf32, #tpu.memory_space<vmem>>, vector<16x128xf32>
    %c0_2 = arith.constant 0 : index
    %c0_3 = arith.constant 0 : index
    %4 = vector.load %arg3[%c0_2, %c0_3] : memref<8x16xf32, #tpu.memory_space<vmem>>, vector<8x16xf32>
    %c0_4 = arith.constant 0 : index
    %c0_5 = arith.constant 0 : index
    %5 = vector.load %arg4[%c0_4, %c0_5] : memref<8x128xf32, #tpu.memory_space<vmem>>, vector<8x128xf32>
    %cst = arith.constant dense<0.000000e+00> : vector<16x128xf32>
    %6 = tpu.matmul %4, %5, %cst {dimension_numbers = #tpu.dot_dimension_numbers<[0], [0], [1], [1], [0, 1, 1, 1], [], []>} : vector<8x16xf32>, vector<8x128xf32>, vector<16x128xf32> -> vector<16x128xf32>
    %7 = arith.addf %3, %6 : vector<16x128xf32>
    %c0_6 = arith.constant 0 : index
    %c0_7 = arith.constant 0 : index
    %8 = vector.load %arg6[%c0_6, %c0_7] : memref<16x128xf32, #tpu.memory_space<vmem>>, vector<16x128xf32>
    tpu.vector_store %arg6[%c0_6, %c0_7], %7 {strides = array<i32>} : memref<16x128xf32, #tpu.memory_space<vmem>>, vector<16x128xf32>,
    %c0_i32_8 = arith.constant 0 : i32
    %9 = arith.cmpi eq, %arg2, %c0_i32_8 : i32
    %10 = arith.extui %9 : i1 to i32
    %c0_i32_9 = arith.constant 0 : i32
    %11 = arith.cmpi ne, %10, %c0_i32_9 : i32
    scf.if %11 {
      %c0_10 = arith.constant 0 : index
      %c0_11 = arith.constant 0 : index
      %12 = vector.load %arg6[%c0_10, %c0_11] : memref<16x128xf32, #tpu.memory_space<vmem>>, vector<16x128xf32>
      %c0_12 = arith.constant 0 : index
      %c0_13 = arith.constant 0 : index
      %13 = vector.load %arg5[%c0_12, %c0_13] : memref<16x128xf32, #tpu.memory_space<vmem>>, vector<16x128xf32>
      tpu.vector_store %arg5[%c0_12, %c0_13], %12 {strides = array<i32>} : memref<16x128xf32, #tpu.memory_space<vmem>>, vector<16x128xf32>,
    } else {
    }
    return
  }
  func.func @transform_0(%arg0: i32, %arg1: i32, %arg2: i32) -> (i32, i32) {
    %c0_i32 = arith.constant 0 : i32
    return %arg2, %arg0 : i32, i32
  }
  func.func @transform_1(%arg0: i32, %arg1: i32, %arg2: i32) -> (i32, i32) {
    %c0_i32 = arith.constant 0 : i32
    return %arg2, %arg1 : i32, i32
  }
  func.func @transform_2(%arg0: i32, %arg1: i32, %arg2: i32) -> (i32, i32) {
    %c0_i32 = arith.constant 0 : i32
    return %arg0, %arg1 : i32, i32
  }
}

</mosaic_0001>

<llo_original>
// kernel: tpu_custom_call.1
$region0: #{tpu_custom_call.1}
  #allocation0 [shape = 'u32[]', space=smem, size = 0x4, offset = 0x4, fixed_abs, tag = 'smem constant byte address 0x4 - core index']
  #allocation1 [shape = 'u32[144,128]{1,0:T(1,128)}', space=vmem, size = 0x12000, scoped, tag = 'internal scratch']
  #allocation2 [shape = 'f32[16,128]{1,0:T(8,128)}', space=vmem, size = 0x2000, scoped, tag = 'scratch operand']
  %s0 = inlined_call_operand.hbm [shape: f32[8,16], index: 0, kind: input, shape index: {}]
  %s1 = inlined_call_operand.hbm [shape: f32[8,128], index: 1, kind: input, shape index: {}]
  %s2 = inlined_call_operand.hbm [shape: f32[16,128], index: 2, kind: output, shape index: {}]
  %s3 = sld [smem:[#allocation0]]
  $region34: #{tpu_custom_call.1} parent=0
    _
  %s5 = ssub.s32 1, %s3
  %s6 = scalar_select 0, %s5, %s3
  $region1: #{tpu_custom_call.1} parent=0
    #allocation3 [shape = 'u8[4096]{0}', space=vmem, size = 0x1000, scoped, tag = 'input window, operand 0, single buffered']
    #allocation4 [shape = 's32[1]{0}', space=sflag, size = 0x4, scoped, tag = 'scoped memory for tpu_custom_call.1']
    #allocation5 [shape = 's32[1]{0}', space=sflag, size = 0x4, scoped, tag = 'scoped memory for tpu_custom_call.1']
    #allocation6 [shape = 'u8[4096]{0}', space=vmem, size = 0x1000, scoped, tag = 'input window, operand 1, single buffered']
    #allocation7 [shape = 's32[1]{0}', space=sflag, size = 0x4, scoped, tag = 'scoped memory for tpu_custom_call.1']
    #allocation8 [shape = 'u8[8192]{0}', space=vmem, size = 0x2000, scoped, tag = 'output window, operand 0, single buffered']
    %7 = vsyncpa [#allocation4], 0
    %8 = vsyncpa [#allocation7], 0
    %9 = vsyncpa [#allocation5], 0
    // Predicated region
    $region2: #{tpu_custom_call.1} parent=1 // pred_check
      _
    $region3: #{tpu_custom_call.1} parent=1 // pred_check_branch
      %11 = sbr.rel (0) target = $region5
    $region4: #{tpu_custom_call.1} parent=1 // pred_region
      %s13 = ssub.s32 128, 128
      %14 = vsyncadd [#allocation4], %s13
      %s16 = sshll.u32 [#allocation3], 4
      %s17 = int_to_ptr.vmem [resolvable:$true] %s16
      %19 = dma.hbm_to_vmem [thread:$0]  %s0, 128, %s17, [#allocation4]
    $region5: #{tpu_custom_call.1} parent=1 // pred_fallthru
      _
    // Predicated region
    $region6: #{tpu_custom_call.1} parent=1 // pred_check
      _
    $region7: #{tpu_custom_call.1} parent=1 // pred_check_branch
      %21 = sbr.rel (0) target = $region9
    $region8: #{tpu_custom_call.1} parent=1 // pred_region
      %s23 = ssub.s32 128, 128
      %24 = vsyncadd [#allocation7], %s23
      %s26 = sshll.u32 [#allocation6], 4
      %s27 = int_to_ptr.vmem [resolvable:$true] %s26
      %29 = dma.hbm_to_vmem [thread:$0]  %s1, 128, %s27, [#allocation7]
    $region9: #{tpu_custom_call.1} parent=1 // pred_fallthru
      _
    // Predicated region
    $region10: #{tpu_custom_call.1} parent=1 // pred_check
      _
    $region11: #{tpu_custom_call.1} parent=1 // pred_check_branch
      %31 = sbr.rel (0) target = $region13
    $region12: #{tpu_custom_call.1} parent=1 // pred_region
      %32 = dma.done [#allocation4], 128
    $region13: #{tpu_custom_call.1} parent=1 // pred_fallthru
      _
    // Predicated region
    $region14: #{tpu_custom_call.1} parent=1 // pred_check
      _
    $region15: #{tpu_custom_call.1} parent=1 // pred_check_branch
      %34 = sbr.rel (0) target = $region17
    $region16: #{tpu_custom_call.1} parent=1 // pred_region
      %35 = dma.done [#allocation7], 128
    $region17: #{tpu_custom_call.1} parent=1 // pred_fallthru
      _
    %p36 = scmp.eq.s32.totalorder 0, 0
    // Predicated region
    $region18: #{tpu_custom_call.1} parent=1 // pred_check
      %p37 = pneg %p36
    $region19: #{tpu_custom_call.1} parent=1 // pred_check_branch
      %39 = sbr.rel (%p37) target = $region21
    $region20: #{tpu_custom_call.1} parent=1 // pred_region
      %40 = vst [vmem:[#allocation2] sm:$0xff] 0.0
      %41 = vst [vmem:[#allocation2 + $0x8] sm:$0xff] 0.0
    $region21: #{tpu_custom_call.1} parent=1 // pred_fallthru
      _
    %v42 = vld [vmem:[#allocation2] sm:$0xff]
    %v43 = vld [vmem:[#allocation2 + $0x8] sm:$0xff]
    %v44 = vld [vmem:[#allocation3] sm:$0xff]
    %v45 = vld [vmem:[#allocation6] sm:$0xff]
    %46 = vxpose.xlu0.b32.start [1/16] %v44, 128
    %47 = vxpose.xlu0.b32.cont [2/16] 0.0, 128
    %48 = vxpose.xlu0.b32.cont [3/16] 0.0, 128
    %49 = vxpose.xlu0.b32.cont [4/16] 0.0, 128
    %50 = vxpose.xlu0.b32.cont [5/16] 0.0, 128
    %51 = vxpose.xlu0.b32.cont [6/16] 0.0, 128
    %52 = vxpose.xlu0.b32.cont [7/16] 0.0, 128
    %53 = vxpose.xlu0.b32.cont [8/16] 0.0, 128
    %54 = vxpose.xlu0.b32.cont [9/16] 0.0, 128
    %55 = vxpose.xlu0.b32.cont [10/16] 0.0, 128
    %56 = vxpose.xlu0.b32.cont [11/16] 0.0, 128
    %57 = vxpose.xlu0.b32.cont [12/16] 0.0, 128
    %58 = vxpose.xlu0.b32.cont [13/16] 0.0, 128
    %59 = vxpose.xlu0.b32.cont [14/16] 0.0, 128
    %60 = vxpose.xlu0.b32.cont [15/16] 0.0, 128
    %61 = vxpose.xlu0.b32.end [16/16] 0.0, 128
    %v62 = vpop.trf.xlu0
    %v63 = vpop.trf.xlu0
    %v64 = vpop.trf.xlu0
    %v65 = vpop.trf.xlu0
    %v66 = vpop.trf.xlu0
    %v67 = vpop.trf.xlu0
    %v68 = vpop.trf.xlu0
    %v69 = vpop.trf.xlu0
    %v70 = vpop.trf.xlu0
    %v71 = vpop.trf.xlu0
    %v72 = vpop.trf.xlu0
    %v73 = vpop.trf.xlu0
    %v74 = vpop.trf.xlu0
    %v75 = vpop.trf.xlu0
    %v76 = vpop.trf.xlu0
    %v77 = vpop.trf.xlu0
    %vm78 = vcmask 64512
    %v80 = vsel %vm78, %v62, 0
    %v83 = vsel %vm78, %v63, 0
    %85 = vmatprep.subr.mxu0 0.0
    %86 = vmatpush1.msra.mxu0 %v45
    %87 = vmatprep.subr.mxu0 0.0
    %88 = vmatpush1.msra.mxu0 0.0
    %89 = vmatprep.subr.mxu0 0.0
    %90 = vmatpush1.msra.mxu0 0.0
    %91 = vmatprep.subr.mxu0 0.0
    %92 = vmatpush1.msra.mxu0 0.0
    %93 = vmatprep.subr.mxu0 0.0
    %94 = vmatpush1.msra.mxu0 0.0
    %95 = vmatprep.subr.mxu0 0.0
    %96 = vmatpush1.msra.mxu0 0.0
    %97 = vmatprep.subr.mxu0 0.0
    %98 = vmatpush1.msra.mxu0 0.0
    %99 = vmatprep.subr.mxu0 0.0
    %100 = vmatpush1.msra.mxu0 0.0
    %101 = vmatprep.subr.mxu0 0.0
    %102 = vmatpush1.msra.mxu0 0.0
    %103 = vmatprep.subr.mxu0 0.0
    %104 = vmatpush1.msra.mxu0 0.0
    %105 = vmatprep.subr.mxu0 0.0
    %106 = vmatpush1.msra.mxu0 0.0
    %107 = vmatprep.subr.mxu0 0.0
    %108 = vmatpush1.msra.mxu0 0.0
    %109 = vmatprep.subr.mxu0 0.0
    %110 = vmatpush1.msra.mxu0 0.0
    %111 = vmatprep.subr.mxu0 0.0
    %112 = vmatpush1.msra.mxu0 0.0
    %113 = vmatprep.subr.mxu0 0.0
    %114 = vmatpush1.msra.mxu0 0.0
    %115 = vmatprep.subr.mxu0 0.0
    %116 = vmatpush1.msra.mxu0 0.0
    %117 = vmatprep.subr.mxu0 0.0
    %118 = vmatpush1.msra.mxu0 0.0
    %119 = vmatprep.subr.mxu0 0.0
    %120 = vmatpush1.msra.mxu0 0.0
    %121 = vmatprep.subr.mxu0 0.0
    %122 = vmatpush1.msra.mxu0 0.0
    %123 = vmatprep.subr.mxu0 0.0
    %124 = vmatpush1.msra.mxu0 0.0
    %125 = vmatprep.subr.mxu0 0.0
    %126 = vmatpush1.msra.mxu0 0.0
    %127 = vmatprep.subr.mxu0 0.0
    %128 = vmatpush1.msra.mxu0 0.0
    %129 = vmatprep.subr.mxu0 0.0
    %130 = vmatpush1.msra.mxu0 0.0
    %131 = vmatprep.subr.mxu0 0.0
    %132 = vmatpush1.msra.mxu0 0.0
    %133 = vmatprep.subr.mxu0 0.0
    %134 = vmatpush1.msra.mxu0 0.0
    %135 = vmatprep.subr.mxu0 0.0
    %136 = vmatpush1.msra.mxu0 0.0
    %137 = vmatprep.subr.mxu0 0.0
    %138 = vmatpush1.msra.mxu0 0.0
    %139 = vmatprep.subr.mxu0 0.0
    %140 = vmatpush1.msra.mxu0 0.0
    %141 = vmatprep.subr.mxu0 0.0
    %142 = vmatpush1.msra.mxu0 0.0
    %143 = vmatprep.subr.mxu0 0.0
    %144 = vmatpush1.msra.mxu0 0.0
    %145 = vmatprep.subr.mxu0 0.0
    %146 = vmatpush1.msra.mxu0 0.0
    %147 = vmatprep.subr.mxu0 0.0
    %148 = vmatpush1.msra.mxu0 0.0
    %149 = vmatprep.mubr.f32.mxu0 0.0
    %150 = vmatmul.mubr.f32.gmra.mrb[0].mxu0 %v80
    %v151 = vpop.f32.mrb[0].mxu0
    %v152 = vadd.f32 0.0, %v151
    %v153 = vpop.f32.mrb[0].mxu0
    %154 = vmatprep.mubr.f32.mxu0 0.0
    %155 = vmatmul.mubr.f32.gmra.mrb[0].mxu0 %v83
    %v156 = vpop.f32.mrb[0].mxu0
    %v157 = vadd.f32 0.0, %v156
    %v158 = vpop.f32.mrb[0].mxu0
    %159 = vdwg.mxu0
    %v160 = vadd.f32 %v42, %v152
    %v161 = vadd.f32 %v43, %v157
    %162 = vst [vmem:[#allocation2] sm:$0xff] %v160
    %163 = vst [vmem:[#allocation2 + $0x8] sm:$0xff] %v161
    // Predicated region
    $region22: #{tpu_custom_call.1} parent=1 // pred_check
      %p164 = pneg %p36
    $region23: #{tpu_custom_call.1} parent=1 // pred_check_branch
      %166 = sbr.rel (%p164) target = $region25
    $region24: #{tpu_custom_call.1} parent=1 // pred_region
      %v167 = vld [vmem:[#allocation2] sm:$0xff]
      %v168 = vld [vmem:[#allocation2 + $0x8] sm:$0xff]
      %169 = vst [vmem:[#allocation8] sm:$0xff] %v167
      %170 = vst [vmem:[#allocation8 + $0x8] sm:$0xff] %v168
    $region25: #{tpu_custom_call.1} parent=1 // pred_fallthru
      _
    // Predicated region
    $region26: #{tpu_custom_call.1} parent=1 // pred_check
      _
    $region27: #{tpu_custom_call.1} parent=1 // pred_check_branch
      %172 = sbr.rel (0) target = $region29
    $region28: #{tpu_custom_call.1} parent=1 // pred_region
      %s174 = ssub.s32 256, 256
      %175 = vsyncadd [#allocation5], %s174
      %s176 = sshll.u32 [#allocation8], 4
      %s177 = int_to_ptr.vmem [resolvable:$true] %s176
      %182 = dma.vmem_to_hbm [thread:$0]  %s177, 256, %s2, [#allocation5], 128, 128, 8
    $region29: #{tpu_custom_call.1} parent=1 // pred_fallthru
      _
    // Predicated region
    $region30: #{tpu_custom_call.1} parent=1 // pred_check
      _
    $region31: #{tpu_custom_call.1} parent=1 // pred_check_branch
      %184 = sbr.rel (0) target = $region33
    $region32: #{tpu_custom_call.1} parent=1 // pred_region
      %185 = dma.done [#allocation5], 256
    $region33: #{tpu_custom_call.1} parent=1 // pred_fallthru
      _
    %186 = vsyncpa [#allocation4], 1
    %187 = vsyncpa [#allocation7], 1
    %188 = vsyncpa [#allocation5], 1

</llo_original>
